<compile_context>
chip_gen: v5e
topology: v5e:2x2
jax: 0.10.0
libtpu: 0.0.40
codegen_flags: <defaults>
</compile_context>

<pallas_src>
import functools
import math

import jax
import jax.numpy as jnp
from jax.experimental import pallas as pl
from jax.experimental.pallas import tpu as pltpu


def _arcface_kernel(cos_ref, label_ref, out_ref, *, s, cos_m, sin_m, block_c):
    # cos_ref:   (tb, tc) input dtype
    # label_ref: (tb, 1)  int32
    # out_ref:   (tb, tc) input dtype
    x = cos_ref[...].astype(jnp.float32)
    lab = label_ref[...]                                        # (tb, 1)

    # Column indices of this tile within the full class dimension.
    j = pl.program_id(1)
    col = j * block_c + jax.lax.broadcasted_iota(jnp.int32, x.shape, 1)

    # Margin is added only at (row, label[row]) for rows with label != -1.
    hit = (col == lab) & (lab != jnp.int32(-1))                 # (tb, tc)

    # cos(acos(x) + m) = x*cos(m) - sqrt(1 - x^2)*sin(m); clamp 1-x^2 at 0.
    sin_theta = jnp.sqrt(jnp.maximum(jnp.float32(1.0) - x * x, jnp.float32(0.0)))
    shifted = x * jnp.float32(cos_m) - sin_theta * jnp.float32(sin_m)

    out = jnp.where(hit, shifted, x) * jnp.float32(s)
    out_ref[...] = out.astype(out_ref.dtype)


def arcface_forward(cosine, label, *, s=64.0, m=0.5, block_b=256, block_c=512):
    """cosine: (B, C) float, label: (B,) int. Returns (B, C) same dtype as cosine."""
    B, C = cosine.shape

    # Tile sizes: either a multiple of (8, 128) or the full dimension.
    tb = block_b if B >= block_b else B
    tc = block_c if C >= block_c else C

    label2d = label.astype(jnp.int32).reshape(B, 1)

    kernel = functools.partial(
        _arcface_kernel,
        s=float(s),
        cos_m=math.cos(float(m)),
        sin_m=math.sin(float(m)),
        block_c=tc,
    )

    grid = (pl.cdiv(B, tb), pl.cdiv(C, tc))

    return pl.pallas_call(
        kernel,
        out_shape=jax.ShapeDtypeStruct((B, C), cosine.dtype),
        grid_spec=pltpu.PrefetchScalarGridSpec(
            num_scalar_prefetch=0,
            grid=grid,
            in_specs=[
                pl.BlockSpec((tb, tc), lambda i, j: (i, j)),
                # Label block does not depend on j -> no re-DMA across C tiles.
                pl.BlockSpec((tb, 1), lambda i, j: (i, 0)),
            ],
            out_specs=pl.BlockSpec((tb, tc), lambda i, j: (i, j)),
        ),
        compiler_params=pltpu.CompilerParams(
            dimension_semantics=("parallel", "parallel"),
        ),
        # The PyTorch op is in-place (acos_/cos_/mul_): reuse the cosine buffer.
        input_output_aliases={0: 0},
    )(cosine, label2d)


def arcface_reference(cosine, label, *, s=64.0, m=0.5):
    """Pure-JAX reference mirroring the PyTorch module (acos / +m / cos / *s)."""
    theta = jnp.arccos(cosine)
    col = jnp.arange(cosine.shape[1])[None, :]
    hit = (col == label[:, None]) & (label[:, None] != -1)
    theta = theta + jnp.where(hit, m, 0.0)
    return jnp.cos(theta) * s


if __name__ == "__main__":
    key = jax.random.PRNGKey(0)
    k_cos, k_lab = jax.random.split(key)

    B, C = 32, 512  # small demo shapes; C = number of classes
    # cosine values strictly inside (-1, 1) so the acos reference is well-defined.
    cosine = jax.random.uniform(
        k_cos, (B, C), dtype=jnp.float32, minval=-0.95, maxval=0.95
    )
    # labels in [0, C), with a couple of -1 ("ignore") entries.
    label = jax.random.randint(k_lab, (B,), 0, C, dtype=jnp.int32)
    label = label.at[1].set(-1).at[5].set(-1)

    # Reference computed BEFORE the kernel call: the kernel aliases (may donate)
    # the cosine buffer into its output.
    ref = arcface_reference(cosine, label, s=64.0, m=0.5)

    # Small tile sizes for the demo so the 2-D grid (4, 4) is actually exercised;
    # production calls use the larger defaults (256, 512).
    out = arcface_forward(cosine, label, s=64.0, m=0.5, block_b=8, block_c=128)
    out = jax.block_until_ready(out)

    assert out.shape == (B, C) and out.dtype == jnp.float32
    assert jnp.allclose(out, ref, atol=1e-3, rtol=1e-4), "mismatch vs reference"

    print("KERNEL_OK")
</pallas_src>

<mosaic_0001>
module attributes {stable_mosaic.version = 11 : i64} {
  func.func @_arcface_kernel(%arg0: i32, %arg1: i32, %arg2: memref<8x128xf32, #tpu.memory_space<vmem>>, %arg3: memref<8x1xi32, #tpu.memory_space<vmem>>, %arg4: memref<8x128xf32, #tpu.memory_space<vmem>>) attributes {dimension_semantics = [#tpu.dimension_semantics<parallel>, #tpu.dimension_semantics<parallel>], iteration_bounds = array<i64: 4, 4>, scalar_prefetch = 0 : i64, scratch_operands = 0 : i64, tpu.core_type = #tpu.core_type<tc>, window_params = [{transform_indices = @transform_0, window_bounds = array<i64: 8, 128>}, {transform_indices = @transform_1, window_bounds = array<i64: 8, 1>}, {transform_indices = @transform_2, window_bounds = array<i64: 8, 128>}]} {
    %c0 = arith.constant 0 : index
    %c0_0 = arith.constant 0 : index
    %0 = vector.load %arg2[%c0, %c0_0] : memref<8x128xf32, #tpu.memory_space<vmem>>, vector<8x128xf32>
    %c0_1 = arith.constant 0 : index
    %c0_2 = arith.constant 0 : index
    %1 = vector.load %arg3[%c0_1, %c0_2] : memref<8x1xi32, #tpu.memory_space<vmem>>, vector<8x1xi32>
    %c128_i32 = arith.constant 128 : i32
    %2 = arith.muli %arg1, %c128_i32 : i32
    %3 = tpu.iota {dimensions = array<i32: 1>} : vector<8x128xi32>
    %4 = vector.broadcast %2 : i32 to vector<8x128xi32>
    %5 = arith.addi %4, %3 : vector<8x128xi32>
    %6 = vector.broadcast %1 : vector<8x1xi32> to vector<8x128xi32>
    %7 = arith.cmpi eq, %5, %6 : vector<8x128xi32>
    %c-1_i32 = arith.constant -1 : i32
    %8 = vector.broadcast %c-1_i32 : i32 to vector<8x1xi32>
    %9 = arith.cmpi ne, %1, %8 : vector<8x1xi32>
    %10 = vector.broadcast %9 : vector<8x1xi1> to vector<8x128xi1>
    %11 = arith.andi %7, %10 : vector<8x128xi1>
    %12 = arith.mulf %0, %0 : vector<8x128xf32>
    %cst = arith.constant 1.000000e+00 : f32
    %13 = vector.broadcast %cst : f32 to vector<8x128xf32>
    %14 = arith.subf %13, %12 : vector<8x128xf32>
    %cst_3 = arith.constant 0.000000e+00 : f32
    %15 = vector.broadcast %cst_3 : f32 to vector<8x128xf32>
    %16 = arith.maximumf %14, %15 : vector<8x128xf32>
    %17 = math.sqrt %16 : vector<8x128xf32>
    %cst_4 = arith.constant 0.87758255 : f32
    %18 = vector.broadcast %cst_4 : f32 to vector<8x128xf32>
    %19 = arith.mulf %0, %18 : vector<8x128xf32>
    %cst_5 = arith.constant 0.47942555 : f32
    %20 = vector.broadcast %cst_5 : f32 to vector<8x128xf32>
    %21 = arith.mulf %17, %20 : vector<8x128xf32>
    %22 = arith.subf %19, %21 : vector<8x128xf32>
    %23 = arith.select %11, %22, %0 : vector<8x128xi1>, vector<8x128xf32>
    %cst_6 = arith.constant 6.400000e+01 : f32
    %24 = vector.broadcast %cst_6 : f32 to vector<8x128xf32>
    %25 = arith.mulf %23, %24 : vector<8x128xf32>
    %c0_7 = arith.constant 0 : index
    %c0_8 = arith.constant 0 : index
    %26 = vector.load %arg4[%c0_7, %c0_8] : memref<8x128xf32, #tpu.memory_space<vmem>>, vector<8x128xf32>
    tpu.vector_store %arg4[%c0_7, %c0_8], %25 {strides = array<i32>} : memref<8x128xf32, #tpu.memory_space<vmem>>, vector<8x128xf32>,
    return
  }
  func.func @transform_0(%arg0: i32, %arg1: i32) -> (i32, i32) {
    %c0_i32 = arith.constant 0 : i32
    return %arg0, %arg1 : i32, i32
  }
  func.func @transform_1(%arg0: i32, %arg1: i32) -> (i32, i32) {
    %c0_i32 = arith.constant 0 : i32
    %c0_i32_0 = arith.constant 0 : i32
    return %arg0, %c0_i32 : i32, i32
  }
  func.func @transform_2(%arg0: i32, %arg1: i32) -> (i32, i32) {
    %c0_i32 = arith.constant 0 : i32
    return %arg0, %arg1 : i32, i32
  }
}

</mosaic_0001>

<llo_original>
// kernel: tpu_custom_call.1
$region0: #{tpu_custom_call.1}
  #allocation0 [shape = 'u32[]', space=smem, size = 0x4, offset = 0x4, fixed_abs, tag = 'smem constant byte address 0x4 - core index']
  #allocation1 [shape = 'u32[72,128]{1,0:T(1,128)}', space=vmem, size = 0x9000, scoped, tag = 'internal scratch']
  %s0 = inlined_call_operand.hbm [shape: f32[32,512], index: 0, kind: input, shape index: {}, may-alias: {0,2}]
  %s1 = inlined_call_operand.vmem [shape: s32[32,1], index: 1, kind: input, shape index: {}]
  %s2 = inlined_call_operand.hbm [shape: f32[32,512], index: 2, kind: output, shape index: {}, may-alias: {0,2}]
  %s3 = sld [smem:[#allocation0]]
  $region45: #{tpu_custom_call.1} parent=0
    _
  %s5 = ssub.s32 1, %s3
  %s6 = scalar_select 0, %s5, %s3
  $region1: #{tpu_custom_call.1} parent=0
    #allocation2 [shape = 'u8[8192]{0}', space=vmem, size = 0x2000, scoped, tag = 'input window, operand 0']
    #allocation3 [shape = 's32[2]{0}', space=sflag, size = 0x8, scoped, tag = 'scoped memory for tpu_custom_call.1']
    #allocation4 [shape = 's32[2]{0}', space=sflag, size = 0x8, scoped, tag = 'scoped memory for tpu_custom_call.1']
    #allocation5 [shape = 'u8[8192]{0}', space=vmem, size = 0x2000, scoped, tag = 'output window, operand 0']
    %7 = vsyncpa [#allocation3], 0
    %s8 = scalar_lea.sflag [#allocation3], 1
    %9 = vsyncpa %s8, 0
    %10 = vsyncpa [#allocation4], 0
    %s11 = scalar_lea.sflag [#allocation4], 1
    %12 = vsyncpa %s11, 0
    loop: start=0, step=1, limit=18
    $region2: #{tpu_custom_call.1} parent=1 // loop_pre_header
      _
    $region3: #{tpu_custom_call.1} parent=1 // loop_header
      %s14 = sphi 0, %s18
      %p15 = scmp.ge.s32.totalorder %s14, 18
      %s21 = sphi 0, %s33
      %s22 = sphi 0, %s29
      %s23 = sphi 0, %s21
      %s24 = sphi 0, %s22
      %s25 = sphi 0, %s23
      %s26 = sphi 0, %s24
      %s38 = sphi 0, %s40
      %s41 = sphi 0, %s38
      %s42 = sphi 0, %s41
      %s58 = sphi 0, %s42
      %s64 = sphi 0, %s66
      %s67 = sphi 0, %s64
      %s68 = sphi 0, %s67
      %s84 = sphi 0, %s68
      %s92 = sphi 0, %s94
      %s95 = sphi 0, %s92
      %s96 = sphi 0, %s95
      %s112 = sphi 0, %s96
    $region4: #{tpu_custom_call.1} parent=1 // loop_header_branch
      %17 = sbr.rel (%p15) target = $region8
    $region5: #{tpu_custom_call.1} parent=1 // loop_body
      %s19 = ssub.s32 %s14, 1
      %s20 = ssub.s32 %s14, 2
      %s27 = sadd.s32 1, %s22
      %p28 = scmp.ge.s32.totalorder %s27, 4
      %s29 = scalar_select %p28, 0, %s27
      %s30 = sadd.s32 1, %s21
      %s31 = scalar_select %p28, %s30, %s21
      %p32 = scmp.ge.s32.totalorder %s31, 4
      %s33 = scalar_select %p32, 0, %s31
      %s34 = ssub.s32 %s21, %s33
      %s35 = ssub.s32 %s22, %s29
      %s36 = sor.u32 %s34, %s35
      %p37 = scmp.eq.s32.totalorder %s36, 0
      %s39 = sadd.s32 %s38, 1
      %s40 = scalar_select %p37, %s38, %s39
      %p43 = pneg %p37
      %p44 = scmp.eq.s32.totalorder %s14, 15
      %p45 = por %p43, %p44
      %p46 = scmp.ne.s32.totalorder %s38, %s41
      %p47 = scmp.eq.s32.totalorder %s14, 0
      %p48 = por %p46, %p47
      %p49 = scmp.ne.s32.totalorder %s38, %s41
      %p50 = scmp.eq.s32.totalorder %s19, 15
      %p51 = por %p49, %p50
      %p52 = scmp.ne.s32.totalorder %s41, %s42
      %p53 = scmp.eq.s32.totalorder %s19, 0
      %p54 = por %p52, %p53
      %p55 = scmp.ne.s32.totalorder %s41, %s42
      %p56 = scmp.eq.s32.totalorder %s20, 15
      %p57 = por %p55, %p56
      %p59 = scmp.ne.s32.totalorder %s42, %s58
      %p60 = scmp.eq.s32.totalorder %s20, 0
      %p61 = por %p59, %p60
      %s62 = ssub.s32 %s21, %s33
      %p63 = scmp.eq.s32.totalorder %s62, 0
      %s65 = sadd.s32 %s64, 1
      %s66 = scalar_select %p63, %s64, %s65
      %p69 = pneg %p63
      %p70 = scmp.eq.s32.totalorder %s14, 15
      %p71 = por %p69, %p70
      %p72 = scmp.ne.s32.totalorder %s64, %s67
      %p73 = scmp.eq.s32.totalorder %s14, 0
      %p74 = por %p72, %p73
      %p75 = scmp.ne.s32.totalorder %s64, %s67
      %p76 = scmp.eq.s32.totalorder %s19, 15
      %p77 = por %p75, %p76
      %p78 = scmp.ne.s32.totalorder %s67, %s68
      %p79 = scmp.eq.s32.totalorder %s19, 0
      %p80 = por %p78, %p79
      %p81 = scmp.ne.s32.totalorder %s67, %s68
      %p82 = scmp.eq.s32.totalorder %s20, 15
      %p83 = por %p81, %p82
      %p85 = scmp.ne.s32.totalorder %s68, %s84
      %p86 = scmp.eq.s32.totalorder %s20, 0
      %p87 = por %p85, %p86
      %s88 = ssub.s32 %s21, %s33
      %s89 = ssub.s32 %s22, %s29
      %s90 = sor.u32 %s88, %s89
      %p91 = scmp.eq.s32.totalorder %s90, 0
      %s93 = sadd.s32 %s92, 1
      %s94 = scalar_select %p91, %s92, %s93
      %p97 = pneg %p91
      %p98 = scmp.eq.s32.totalorder %s14, 15
      %p99 = por %p97, %p98
      %p100 = scmp.ne.s32.totalorder %s92, %s95
      %p101 = scmp.eq.s32.totalorder %s14, 0
      %p102 = por %p100, %p101
      %p103 = scmp.ne.s32.totalorder %s92, %s95
      %p104 = scmp.eq.s32.totalorder %s19, 15
      %p105 = por %p103, %p104
      %p106 = scmp.ne.s32.totalorder %s95, %s96
      %p107 = scmp.eq.s32.totalorder %s19, 0
      %p108 = por %p106, %p107
      %p109 = scmp.ne.s32.totalorder %s95, %s96
      %p110 = scmp.eq.s32.totalorder %s20, 15
      %p111 = por %p109, %p110
      %p113 = scmp.ne.s32.totalorder %s96, %s112
      %p114 = scmp.eq.s32.totalorder %s20, 0
      %p115 = por %p113, %p114
      %p116 = scmp.le.s32.totalorder 1, %s14
      %p117 = scmp.lt.s32.totalorder %s14, 17
      %p118 = pnand %p116, %p117
      %p119 = pneg %p118
      // Predicated region
      $region9: #{tpu_custom_call.1} parent=5 // pred_check
        _
      $region10: #{tpu_custom_call.1} parent=5 // pred_check_branch
        %121 = sbr.rel (%p118) target = $region12
      $region11: #{tpu_custom_call.1} parent=5 // pred_region
        %s122 = ssub.s32 %s14, 1
      $region12: #{tpu_custom_call.1} parent=5 // pred_fallthru
        _
      %p123 = scmp.lt.s32.totalorder %s14, 16
      // Predicated region
      $region13: #{tpu_custom_call.1} parent=5 // pred_check
        %p124 = pneg %p123
      $region14: #{tpu_custom_call.1} parent=5 // pred_check_branch
        %126 = sbr.rel (%p124) target = $region16
      $region15: #{tpu_custom_call.1} parent=5 // pred_region
        // Predicated region
        $region17: #{tpu_custom_call.1} parent=15 // pred_check
          %p127 = pneg %p48
        $region18: #{tpu_custom_call.1} parent=15 // pred_check_branch
          %129 = sbr.rel (%p127) target = $region20
        $region19: #{tpu_custom_call.1} parent=15 // pred_region
          %s130 = sand.u32 %s38, 1
          %s131 = scalar_lea.sflag [#allocation3], %s130
          %s132 = sand.u32 %s38, 1
          %s133 = smul.addr %s132, 8
          %s134 = scalar_lea.vmem [#allocation2], %s133
          %136 = vsyncadd %s131, 0
          %s137 = smul.addr %s21, 4
          %s138 = sadd.s32 %s22, %s137
          %s139 = smul.addr %s138, 8
          %s140 = scalar_lea.hbm %s0, %s139
          %s142 = sshll.u32 %s140, 4
          %s143 = int_to_ptr.hbm [resolvable:$true] %s142
          %s144 = sshll.u32 %s134, 4
          %s145 = int_to_ptr.vmem [resolvable:$true] %s144
          %147 = dma.hbm_to_vmem [thread:$0]  %s143, 128, %s145, %s131
        $region20: #{tpu_custom_call.1} parent=15 // pred_fallthru
          _
        // Predicated region
        $region21: #{tpu_custom_call.1} parent=15 // pred_check
          %p148 = pneg %p74
        $region22: #{tpu_custom_call.1} parent=15 // pred_check_branch
          %150 = sbr.rel (%p148) target = $region24
        $region23: #{tpu_custom_call.1} parent=15 // pred_region
          %p151 = scmp.lt.s32.totalorder %s21, 3
          %s152 = scalar_select %p151, %s21, 3
          %s153 = smul.addr %s152, 8
          %s154 = scalar_lea.vmem %s1, %s153
        $region24: #{tpu_custom_call.1} parent=15 // pred_fallthru
          _
      $region16: #{tpu_custom_call.1} parent=5 // pred_fallthru
        _
      %p155 = scmp.le.s32.totalorder 1, %s14
      %p156 = scmp.lt.s32.totalorder %s14, 17
      %p157 = pnand %p155, %p156
      %p158 = pneg %p157
      // Predicated region
      $region25: #{tpu_custom_call.1} parent=5 // pred_check
        _
      $region26: #{tpu_custom_call.1} parent=5 // pred_check_branch
        %160 = sbr.rel (%p157) target = $region28
      $region27: #{tpu_custom_call.1} parent=5 // pred_region
        %s161 = ssub.s32 %s14, 1
        %s162 = sand.u32 %s41, 1
        %s163 = scalar_lea.sflag [#allocation3], %s162
        %s164 = sand.u32 %s41, 1
        %s165 = smul.addr %s164, 8
        %s166 = scalar_lea.vmem [#allocation2], %s165
        // Predicated region
        $region29: #{tpu_custom_call.1} parent=27 // pred_check
          %p167 = pneg %p54
        $region30: #{tpu_custom_call.1} parent=27 // pred_check_branch
          %169 = sbr.rel (%p167) target = $region32
        $region31: #{tpu_custom_call.1} parent=27 // pred_region
          %171 = dma.done %s163, 128
        $region32: #{tpu_custom_call.1} parent=27 // pred_fallthru
          _
        %s172 = sand.u32 %s41, 1
        %s173 = scalar_lea.sflag [#allocation3], %s172
        %s174 = sand.u32 %s41, 1
        %s175 = smul.addr %s174, 8
        %s176 = scalar_lea.vmem [#allocation2], %s175
        %p177 = pneg %p54
        %p178 = pneg %p51
        %p179 = scmp.lt.s32.totalorder %s23, 3
        %s180 = scalar_select %p179, %s23, 3
        %s181 = smul.addr %s180, 8
        %s182 = scalar_lea.vmem %s1, %s181
        %p183 = pneg %p80
        %p184 = pneg %p77
        %p185 = pneg %p108
        %p186 = pneg %p105
        %s187 = sand.u32 %s95, 1
        %s188 = scalar_lea.sflag [#allocation4], %s187
        %s189 = sand.u32 %s95, 1
        %s190 = smul.addr %s189, 8
        %s191 = scalar_lea.vmem [#allocation5], %s190
        %p192 = scmp.lt.s32.totalorder %s23, 3
        %s193 = scalar_select %p192, %s23, 3
        %s194 = smul.addr %s193, 8
        %s195 = scalar_lea.vmem %s1, %s194
        %v196 = vld [vmem:[%s166] sm:$0xff]
        %v197 = vld [vmem:[%s195] sm:$0xff]
        %s198 = smul.u32 %s24, 128
        %v199 = vlaneseq
        %v200 = vand.u32 %v199, 127
        %v201 = vstv %s198
        %v202 = vadd.s32 %v201, %v200
        %203 = vset.pattern.permute.xlu0 0
        %204 = vperm.xlu0 %203, %v197
        %v205 = vpop.permute.xlu0 %204
        %vm206 = vcmp.eq.s32.totalorder %v202, %v205
        %vm207 = vcmp.ne.s32.totalorder %v197, 4294967295
        %v208 = vsel %vm207, 1, 0
        %209 = vset.pattern.permute.xlu0 0
        %210 = vperm.xlu0 %209, %v208
        %v211 = vpop.permute.xlu0 %210
        %vm212 = vcmp.eq.s32.totalorder %v211, 1
        %vm213 = vmand %vm206, %vm212
        %v214 = vmul.f32 %v196, %v196
        %v215 = vsub.f32 1.0, %v214
        %v216 = vmax.f32 %v215, 0.0
        %v217 = vrsqrt.pop %v216
        %v218 = vmul.f32 %v217, %v216
        %v219 = vmul.f32 %v218, %v217
        %v220 = vmul.f32 0.5, %v219
        %v221 = vsub.f32 1.5, %v220
        %v222 = vmul.f32 %v217, %v221
        %v223 = vmul.f32 %v216, %v222
        %vm224 = vcmp.eq.f32.partialorder %v216, inf
        %v225 = vsel %vm224, %v216, %v223
        %vm226 = vcmp.eq.f32.partialorder %v216, 0.0
        %v227 = vand.u32 %v216, 2147483648
        %v228 = vsel %vm226, %v227, %v225
        %v229 = vmul.f32 %v196, 0.87758255
        %v230 = vmul.f32 %v228, 0.47942555
        %v231 = vsub.f32 %v229, %v230
        %v232 = vsel %vm213, %v231, %v196
        %v233 = vmul.f32 %v232, 64.0
        %234 = vst [vmem:[%s191] sm:$0xff] %v233
        %s235 = sand.u32 %s95, 1
        %s236 = scalar_lea.sflag [#allocation4], %s235
        %s237 = sand.u32 %s95, 1
        %s238 = smul.addr %s237, 8
        %s239 = scalar_lea.vmem [#allocation5], %s238
        // Predicated region
        $region33: #{tpu_custom_call.1} parent=27 // pred_check
          %p240 = pneg %p105
        $region34: #{tpu_custom_call.1} parent=27 // pred_check_branch
          %242 = sbr.rel (%p240) target = $region36
        $region35: #{tpu_custom_call.1} parent=27 // pred_region
          %244 = vsyncadd %s236, 0
          %s245 = smul.addr %s23, 4
          %s246 = sadd.s32 %s24, %s245
          %s247 = smul.addr %s246, 8
          %s248 = scalar_lea.hbm %s2, %s247
          %s250 = sshll.u32 %s239, 4
          %s251 = int_to_ptr.vmem [resolvable:$true] %s250
          %s252 = sshll.u32 %s248, 4
          %s253 = int_to_ptr.hbm [resolvable:$true] %s252
          %255 = dma.vmem_to_hbm [thread:$0]  %s251, 128, %s253, %s236
        $region36: #{tpu_custom_call.1} parent=27 // pred_fallthru
          _
      $region28: #{tpu_custom_call.1} parent=5 // pred_fallthru
        _
      %p256 = scmp.le.s32.totalorder 2, %s14
      // Predicated region
      $region37: #{tpu_custom_call.1} parent=5 // pred_check
        %p257 = pneg %p256
      $region38: #{tpu_custom_call.1} parent=5 // pred_check_branch
        %259 = sbr.rel (%p257) target = $region40
      $region39: #{tpu_custom_call.1} parent=5 // pred_region
        %s260 = ssub.s32 %s14, 2
        // Predicated region
        $region41: #{tpu_custom_call.1} parent=39 // pred_check
          %p261 = pneg %p111
        $region42: #{tpu_custom_call.1} parent=39 // pred_check_branch
          %263 = sbr.rel (%p261) target = $region44
        $region43: #{tpu_custom_call.1} parent=39 // pred_region
          %s264 = sand.u32 %s96, 1
          %s265 = scalar_lea.sflag [#allocation4], %s264
          %s266 = sand.u32 %s96, 1
          %s267 = smul.addr %s266, 8
          %s268 = scalar_lea.vmem [#allocation5], %s267
          %270 = dma.done %s265, 128
        $region44: #{tpu_custom_call.1} parent=39 // pred_fallthru
          _
      $region40: #{tpu_custom_call.1} parent=5 // pred_fallthru
        _
    $region6: #{tpu_custom_call.1} parent=1 // loop_footer
      %s18 = sadd.s32 1, %s14
    $region7: #{tpu_custom_call.1} parent=1 // loop_footer_branch
      %13 = sbr.rel target = $region3
    $region8: #{tpu_custom_call.1} parent=1 // loop_exit
      _
    %271 = vsyncpa [#allocation3], 1
    %s272 = scalar_lea.sflag [#allocation3], 1
    %273 = vsyncpa %s272, 1
    %274 = vsyncpa [#allocation4], 1
    %s275 = scalar_lea.sflag [#allocation4], 1
    %276 = vsyncpa %s275, 1

</llo_original>
